<compile_context>
chip_gen: v7x
topology: tpu7x:2x2x1
jax: 0.10.0
libtpu: 0.0.40
codegen_flags: <defaults>
</compile_context>

<pallas_src>
import functools

import jax
import jax.numpy as jnp
from jax.experimental import pallas as pl
from jax.experimental.pallas import tpu as pltpu


def _round_up(x: int, m: int) -> int:
    return ((x + m - 1) // m) * m


def _ce_label_smooth_kernel(x_ref, t_ref, out_ref, *, epsilon: float,
                            num_classes: int, batch_size: int, block_b: int,
                            mask_rows: bool):
    # x_ref:  (TB, K) logits tile (f32 or bf16; compute in f32)
    # t_ref:  (TB, 1) int32 labels tile
    # out_ref: (1, 1) SMEM partial-loss slot for this tile
    x = x_ref[...].astype(jnp.float32)
    labels = t_ref[...]                                   # (TB, 1)
    tb, k = x.shape

    # Numerically stable log-sum-exp over classes (dim=1).
    m = jnp.max(x, axis=1, keepdims=True)                 # (TB, 1)
    lse = jnp.log(jnp.sum(jnp.exp(x - m), axis=1, keepdims=True)) + m

    # Fused smoothed-target dot product:
    #   sum_k w_k * x_k,  w_k = eps/K + (1-eps)*[k == y_b]
    class_ids = jax.lax.broadcasted_iota(jnp.int32, (tb, k), 1)
    w = jnp.where(class_ids == labels,
                  jnp.float32(1.0 - epsilon + epsilon / num_classes),
                  jnp.float32(epsilon / num_classes))
    tgt_dot = jnp.sum(w * x, axis=1, keepdims=True)       # (TB, 1)

    per_row = lse - tgt_dot                               # (TB, 1)

    if mask_rows:
        # Only emitted when the wrapper actually padded the batch.
        row_ids = (pl.program_id(0) * block_b
                   + jax.lax.broadcasted_iota(jnp.int32, (tb, 1), 0))
        per_row = jnp.where(row_ids < batch_size, per_row, 0.0)

    out_ref[0, 0] = jnp.sum(per_row)


def cross_entropy_label_smooth(inputs, targets, num_classes, epsilon=0.1,
                               block_b=256, vmem_budget_bytes=8 << 20):
    """inputs: (B, num_classes) float logits (f32 or bf16); targets: (B,) ints."""
    B, K = inputs.shape
    assert K == num_classes

    # Batch tile: multiple of 8 sublanes, capped by block_b and by a VMEM
    # budget for the (double-buffered) f32 logits tile.
    rows_by_vmem = max(8, (vmem_budget_bytes // (K * 4 * 2)) // 8 * 8)
    tb = min(int(block_b), rows_by_vmem, _round_up(B, 8))
    tb = _round_up(max(tb, 8), 8)
    num_tiles = pl.cdiv(B, tb)
    b_pad = num_tiles * tb

    x = inputs
    t = targets.astype(jnp.int32).reshape(B, 1)
    if b_pad != B:
        x = jnp.pad(x, ((0, b_pad - B), (0, 0)))
        t = jnp.pad(t, ((0, b_pad - B), (0, 0)))

    kernel = functools.partial(
        _ce_label_smooth_kernel,
        epsilon=float(epsilon),
        num_classes=int(num_classes),
        batch_size=int(B),
        block_b=int(tb),
        mask_rows=(b_pad != B),
    )

    partials = pl.pallas_call(
        kernel,
        out_shape=jax.ShapeDtypeStruct((num_tiles, 1), jnp.float32),
        grid=(num_tiles,),
        in_specs=[
            pl.BlockSpec((tb, K), lambda i: (i, 0)),   # logits tile -> VMEM
            pl.BlockSpec((tb, 1), lambda i: (i, 0)),   # label tile  -> VMEM
        ],
        out_specs=pl.BlockSpec((1, 1), lambda i: (i, 0),
                               memory_space=pltpu.SMEM),
        compiler_params=pltpu.CompilerParams(
            dimension_semantics=("parallel",)),
    )(x, t)

    # Final tiny reduction + 1/B normalization done once, outside the kernel.
    return jnp.sum(partials) / B


def _reference(inputs, targets, num_classes, epsilon=0.1):
    log_probs = jax.nn.log_softmax(inputs.astype(jnp.float32), axis=1)
    onehot = jax.nn.one_hot(targets, num_classes, dtype=jnp.float32)
    smoothed = (1.0 - epsilon) * onehot + epsilon / num_classes
    return jnp.sum(jnp.mean(-smoothed * log_probs, axis=0))


if __name__ == "__main__":
    epsilon = 0.1
    key = jax.random.PRNGKey(0)
    k1, k2, k3, k4, k5, k6 = jax.random.split(key, 6)

    # Case 1: toy shape, single tile, f32.
    B1, K1 = 8, 16
    logits1 = jax.random.normal(k1, (B1, K1), dtype=jnp.float32)
    labels1 = jax.random.randint(k2, (B1,), 0, K1, dtype=jnp.int32)
    loss1 = jax.block_until_ready(
        cross_entropy_label_smooth(logits1, labels1, K1, epsilon))
    ref1 = _reference(logits1, labels1, K1, epsilon)
    assert jnp.allclose(loss1, ref1, rtol=1e-5, atol=1e-5), (loss1, ref1)

    # Case 2: ragged batch across multiple grid tiles (block_b=8 -> 3 tiles).
    B2, K2 = 20, 16
    logits2 = jax.random.normal(k3, (B2, K2), dtype=jnp.float32)
    labels2 = jax.random.randint(k4, (B2,), 0, K2, dtype=jnp.int32)
    loss2 = jax.block_until_ready(
        cross_entropy_label_smooth(logits2, labels2, K2, epsilon, block_b=8))
    ref2 = _reference(logits2, labels2, K2, epsilon)
    assert jnp.allclose(loss2, ref2, rtol=1e-5, atol=1e-5), (loss2, ref2)

    # Case 3: bf16 logits, lane-dense class dim.
    B3, K3 = 16, 128
    logits3 = jax.random.normal(k5, (B3, K3), dtype=jnp.bfloat16)
    labels3 = jax.random.randint(k6, (B3,), 0, K3, dtype=jnp.int32)
    loss3 = jax.block_until_ready(
        cross_entropy_label_smooth(logits3, labels3, K3, epsilon))
    ref3 = _reference(logits3, labels3, K3, epsilon)
    assert jnp.allclose(loss3, ref3, rtol=2e-2, atol=2e-2), (loss3, ref3)

    print("KERNEL_OK")
</pallas_src>

<mosaic_0001>
module attributes {stable_mosaic.version = 11 : i64} {
  func.func @_ce_label_smooth_kernel(%arg0: i32, %arg1: memref<8x16xf32, #tpu.memory_space<vmem>>, %arg2: memref<8x1xi32, #tpu.memory_space<vmem>>, %arg3: memref<1x1xf32, #tpu.memory_space<smem>>) attributes {dimension_semantics = [#tpu.dimension_semantics<parallel>], iteration_bounds = array<i64: 1>, scalar_prefetch = 0 : i64, scratch_operands = 0 : i64, tpu.core_type = #tpu.core_type<tc>, window_params = [{transform_indices = @transform_0, window_bounds = array<i64: 8, 16>}, {transform_indices = @transform_1, window_bounds = array<i64: 8, 1>}, {transform_indices = @transform_2, window_bounds = array<i64: 1, 1>}]} {
    %c0 = arith.constant 0 : index
    %c0_0 = arith.constant 0 : index
    %0 = vector.load %arg1[%c0, %c0_0] : memref<8x16xf32, #tpu.memory_space<vmem>>, vector<8x16xf32>
    %c0_1 = arith.constant 0 : index
    %c0_2 = arith.constant 0 : index
    %1 = vector.load %arg2[%c0_1, %c0_2] : memref<8x1xi32, #tpu.memory_space<vmem>>, vector<8x1xi32>
    %cst = arith.constant dense<0xFF800000> : vector<8xf32>
    %2 = vector.multi_reduction <maximumf>, %0, %cst [1] : vector<8x16xf32> to vector<8xf32>
    %3 = vector.shape_cast %2 : vector<8xf32> to vector<8x1xf32>
    %4 = vector.broadcast %3 : vector<8x1xf32> to vector<8x16xf32>
    %5 = arith.subf %0, %4 : vector<8x16xf32>
    %6 = math.exp %5 : vector<8x16xf32>
    %cst_3 = arith.constant dense<0.000000e+00> : vector<8xf32>
    %7 = vector.multi_reduction <add>, %6, %cst_3 [1] : vector<8x16xf32> to vector<8xf32>
    %8 = vector.shape_cast %7 : vector<8xf32> to vector<8x1xf32>
    %9 = math.log %8 : vector<8x1xf32>
    %10 = arith.addf %9, %3 : vector<8x1xf32>
    %11 = tpu.iota {dimensions = array<i32: 1>} : vector<8x16xi32>
    %12 = vector.broadcast %1 : vector<8x1xi32> to vector<8x16xi32>
    %13 = arith.cmpi eq, %11, %12 : vector<8x16xi32>
    %cst_4 = arith.constant 9.062500e-01 : f32
    %cst_5 = arith.constant 6.250000e-03 : f32
    %14 = vector.broadcast %cst_4 : f32 to vector<8x16xf32>
    %15 = vector.broadcast %cst_5 : f32 to vector<8x16xf32>
    %16 = arith.select %13, %14, %15 : vector<8x16xi1>, vector<8x16xf32>
    %17 = arith.mulf %16, %0 : vector<8x16xf32>
    %cst_6 = arith.constant dense<0.000000e+00> : vector<8xf32>
    %18 = vector.multi_reduction <add>, %17, %cst_6 [1] : vector<8x16xf32> to vector<8xf32>
    %19 = vector.shape_cast %18 : vector<8xf32> to vector<8x1xf32>
    %20 = arith.subf %10, %19 : vector<8x1xf32>
    %21 = vector.shape_cast %20 : vector<8x1xf32> to vector<1x8x1xf32>
    %cst_7 = arith.constant dense<0.000000e+00> : vector<1xf32>
    %22 = vector.multi_reduction <add>, %21, %cst_7 [1, 2] : vector<1x8x1xf32> to vector<1xf32>
    %23 = vector.shape_cast %22 : vector<1xf32> to vector<1x1x1xf32>
    %24 = vector.extract %23[0, 0, 0] : f32 from vector<1x1x1xf32>
    %c0_8 = arith.constant 0 : index
    %c0_9 = arith.constant 0 : index
    %25 = memref.load %arg3[%c0_8, %c0_9] : memref<1x1xf32, #tpu.memory_space<smem>>
    memref.store %24, %arg3[%c0_8, %c0_9] : memref<1x1xf32, #tpu.memory_space<smem>>
    return
  }
  func.func @transform_0(%arg0: i32) -> (i32, i32) {
    %c0_i32 = arith.constant 0 : i32
    %c0_i32_0 = arith.constant 0 : i32
    return %arg0, %c0_i32 : i32, i32
  }
  func.func @transform_1(%arg0: i32) -> (i32, i32) {
    %c0_i32 = arith.constant 0 : i32
    %c0_i32_0 = arith.constant 0 : i32
    return %arg0, %c0_i32 : i32, i32
  }
  func.func @transform_2(%arg0: i32) -> (i32, i32) {
    %c0_i32 = arith.constant 0 : i32
    %c0_i32_0 = arith.constant 0 : i32
    return %arg0, %c0_i32 : i32, i32
  }
}

</mosaic_0001>

<llo_original>
// kernel: tpu_custom_call.1
$region0: #{tpu_custom_call.1}
  #allocation0 [shape = 'u32[]', space=smem, size = 0x4, offset = 0x4, fixed_abs, tag = 'smem constant byte address 0x4 - core index']
  #allocation1 [shape = 'u32[144,128]{1,0:T(1,128)}', space=vmem, size = 0x12000, scoped, tag = 'internal scratch']
  %s0 = inlined_call_operand.vmem [shape: f32[8,16], index: 0, kind: input, shape index: {}]
  %s1 = inlined_call_operand.vmem [shape: s32[8,1], index: 1, kind: input, shape index: {}]
  %s2 = inlined_call_operand.hbm [shape: f32[1,1], index: 2, kind: output, shape index: {}]
  %s3 = sld [smem:[#allocation0]]
  $region18: #{tpu_custom_call.1} parent=0
    _
  %s5 = ssub.s32 1, %s3
  %s6 = scalar_select 0, %s5, %s3
  $region1: #{tpu_custom_call.1} parent=0
    #allocation2 [shape = 'u8[512]{0}', space=smem, size = 0x200, scoped, tag = 'output window, operand 0, single buffered']
    #allocation3 [shape = 's32[1]{0}', space=sflag, size = 0x4, scoped, tag = 'scoped memory for tpu_custom_call.1']
    %7 = vsyncpa [#allocation3], 0
    // Predicated region
    $region2: #{tpu_custom_call.1} parent=1 // pred_check
      _
    $region3: #{tpu_custom_call.1} parent=1 // pred_check_branch
      %9 = sbr.rel (0) target = $region5
    $region4: #{tpu_custom_call.1} parent=1 // pred_region
      _
    $region5: #{tpu_custom_call.1} parent=1 // pred_fallthru
      _
    // Predicated region
    $region6: #{tpu_custom_call.1} parent=1 // pred_check
      _
    $region7: #{tpu_custom_call.1} parent=1 // pred_check_branch
      %11 = sbr.rel (0) target = $region9
    $region8: #{tpu_custom_call.1} parent=1 // pred_region
      _
    $region9: #{tpu_custom_call.1} parent=1 // pred_fallthru
      _
    %v12 = vld [vmem:[%s0] sm:$0xff]
    %v13 = vld [vmem:[%s1] sm:$0xff]
    %vm14 = vcmask 130048
    %v15 = vsel %vm14, %v12, -inf
    %16 = vmax.xlane.f32.xlu0 %v15
    %v17 = vpop.xlane.xlu0 %16
    %v18 = vsub.f32 %v12, %v17
    %v19 = vmul.f32 %v18, 1.442695
    %v20 = vpow.pop %v19
    %v21 = vsel %vm14, %v20, 0.0
    %22 = vadd.xlane.f32.xlu0 %v21
    %v23 = vpop.xlane.xlu0 %22
    %v24 = vlog2.pop %v23
    %v25 = vmul.f32 %v24, 0.6931472
    %v26 = vadd.f32 %v25, %v17
    %v27 = vlaneseq
    %v28 = vand.u32 %v27, 127
    %29 = vset.pattern.permute.xlu0 0
    %30 = vperm.xlu0 %29, %v13
    %v31 = vpop.permute.xlu0 %30
    %vm32 = vcmp.eq.s32.totalorder %v28, %v31
    %v33 = vsel %vm32, 0.90625, 0.00625
    %v34 = vmul.f32 %v33, %v12
    %v35 = vsel %vm14, %v34, 0.0
    %36 = vadd.xlane.f32.xlu0 %v35
    %v37 = vpop.xlane.xlu0 %36
    %v38 = vsub.f32 %v26, %v37
    %vm39 = vcmask 7168
    %v40 = vsel %vm39, %v38, 0.0
    %41 = vadd.xlane.f32.xlu0 %v40
    %v42 = vpop.xlane.xlu0 %41
    %v43 = vrot.slane %v42, 4
    %v44 = vadd.f32 %v42, %v43
    %v45 = vrot.slane %v44, 2
    %v46 = vadd.f32 %v44, %v45
    %v47 = vrot.slane %v46, 1
    %v48 = vadd.f32 %v46, %v47
    %s49 = vtos %v48
    %s50 = scalar_lea.smem [#allocation2], 0
    %51 = sst [smem:[%s50]] %s49
    // Predicated region
    $region10: #{tpu_custom_call.1} parent=1 // pred_check
      _
    $region11: #{tpu_custom_call.1} parent=1 // pred_check_branch
      %53 = sbr.rel (0) target = $region13
    $region12: #{tpu_custom_call.1} parent=1 // pred_region
      %s55 = ssub.s32 16, 16
      %56 = vsyncadd [#allocation3], %s55
      %59 = dma.smem_to_hbm [#allocation2], 16, %s2, [#allocation3]
    $region13: #{tpu_custom_call.1} parent=1 // pred_fallthru
      _
    // Predicated region
    $region14: #{tpu_custom_call.1} parent=1 // pred_check
      _
    $region15: #{tpu_custom_call.1} parent=1 // pred_check_branch
      %61 = sbr.rel (0) target = $region17
    $region16: #{tpu_custom_call.1} parent=1 // pred_region
      %62 = dma.done [#allocation3], 16
    $region17: #{tpu_custom_call.1} parent=1 // pred_fallthru
      _
    %63 = sfence
    %64 = vsyncpa [#allocation3], 1

</llo_original>
